<compile_context>
chip_gen: v6e
topology: v6e:2x2x1
jax: 0.10.0
libtpu: 0.0.40
codegen_flags: <defaults>
</compile_context>

<pallas_src>
import functools

import jax
import jax.numpy as jnp
from jax.experimental import pallas as pl
from jax.experimental.pallas import tpu as pltpu


def _vmem_capacity_bytes():
    try:
        return int(pltpu.get_tpu_info().vmem_capacity_bytes)
    except Exception:
        return 128 * 1024 * 1024  # v5e / v6e default


def _pick_row_tile(cw, vmem_bytes):
    """Pick (TM, CW_pad): query-row tile size and padded row count."""
    # Per-generation cap: half-size tiles on 64 MiB-VMEM chips (v7x).
    tm_cap = 256 if vmem_bytes <= 64 * 1024 * 1024 else 512
    # The (TM, CW) f32 energy block + bf16 attention block ~ 6*TM*CW bytes;
    # keep it inside ~1/4 of physical VMEM to leave room for the resident
    # (H, CW) key slab and the double-buffered query/output tiles.
    budget = vmem_bytes // 4
    tm_fit = max(128, (budget // max(1, 6 * cw)) // 128 * 128)
    tm_max = min(tm_cap, tm_fit)
    if cw <= tm_max:
        return cw, cw  # single row tile covering all rows (handles small/ragged CW)
    cw_pad = -(-cw // tm_max) * tm_max  # TM is a multiple of 128 here
    return tm_max, cw_pad


def _cwcw_kernel(gamma_ref, qrow_ref, qfull_ref, o_ref, *, matmul_dtype):
    # gamma_ref: (1,) f32 scalar in SMEM (read once).
    # qrow_ref : (1, H, TM)  query-row tile, lane-dense in CW.
    # qfull_ref: (1, H, CW)  full keys/values, resident across the row-tile axis.
    # o_ref    : (1, H, TM)  output tile (transposed layout).
    gamma = gamma_ref[0]
    q_rows = qrow_ref[0].astype(jnp.float32)   # (H, TM)
    q_full = qfull_ref[0].astype(jnp.float32)  # (H, CW)

    q_rows_mx = q_rows.astype(matmul_dtype)
    q_full_mx = q_full.astype(matmul_dtype)

    # energy[i, j] = sum_h Q[i, h] * Q[j, h]   (== Q_rows @ Q_full^T), expressed
    # as a direct contraction over H — no explicit transpose of the operand.
    energy = jax.lax.dot_general(
        q_rows_mx, q_full_mx,
        dimension_numbers=(((0,), (0,)), ((), ())),
        preferred_element_type=jnp.float32)            # (TM, CW) f32

    e_max = jnp.max(energy, axis=-1, keepdims=True)    # (TM, 1)
    # sigmoid(x) == 0.5 * (tanh(0.5 * x) + 1): single EUP op per element.
    attention = 0.5 * (jnp.tanh(0.5 * (e_max - energy)) + 1.0)  # (TM, CW) f32

    # out^T[h, i] = sum_j attention[i, j] * Q[j, h]  -> lane-dense (H, TM)
    out_t = jax.lax.dot_general(
        q_full_mx, attention.astype(matmul_dtype),
        dimension_numbers=(((1,), (1,)), ((), ())),
        preferred_element_type=jnp.float32)            # (H, TM) f32

    # Residual epilogue in f32 with the original (un-cast) query tile.
    o_ref[0] = (gamma * out_t + q_rows).astype(o_ref.dtype)


def cwcw_module(x, gamma, *, matmul_dtype=jnp.bfloat16):
    """x: (B, C, H, W); gamma: (1,) — equivalent of CWCW_Module.forward."""
    B, C, H, W = x.shape
    CW = C * W

    # Same raw flattening as torch's contiguous x.view(B, C*W, -1), then put CW
    # on the lane (last) axis so kernel I/O and the epilogue are lane-dense.
    xq_t = jnp.transpose(jnp.reshape(x, (B, CW, H)), (0, 2, 1))  # (B, H, CW)

    vmem_bytes = _vmem_capacity_bytes()
    TM, CW_pad = _pick_row_tile(CW, vmem_bytes)
    n_row_tiles = CW_pad // TM

    # Pad only the *query* rows (keys/values stay exact); padded query rows
    # produce garbage output columns that are sliced off below and cannot
    # affect the valid rows.
    if CW_pad != CW:
        xq_query = jnp.pad(xq_t, ((0, 0), (0, 0), (0, CW_pad - CW)))
    else:
        xq_query = xq_t

    kernel = functools.partial(_cwcw_kernel, matmul_dtype=matmul_dtype)

    out_t = pl.pallas_call(
        kernel,
        out_shape=jax.ShapeDtypeStruct((B, H, CW_pad), x.dtype),
        grid_spec=pltpu.PrefetchScalarGridSpec(
            num_scalar_prefetch=0,
            grid=(B, n_row_tiles),
            in_specs=[
                pl.BlockSpec(memory_space=pltpu.MemorySpace.SMEM),    # gamma
                pl.BlockSpec((1, H, TM), lambda b, m: (b, 0, m)),     # query rows
                pl.BlockSpec((1, H, CW), lambda b, m: (b, 0, 0)),     # full K/V slab
            ],
            out_specs=pl.BlockSpec((1, H, TM), lambda b, m: (b, 0, m)),
        ),
        compiler_params=pltpu.CompilerParams(
            dimension_semantics=("parallel", "parallel"),
            vmem_limit_bytes=int(vmem_bytes * 3 // 4),
        ),
    )(gamma, xq_query, xq_t)

    out = jnp.transpose(out_t[:, :, :CW], (0, 2, 1))  # (B, CW, H)
    return jnp.reshape(out, (B, C, H, W))


def _reference(x, gamma):
    """Plain-JAX f32 reference mirroring the PyTorch forward exactly."""
    B, C, H, W = x.shape
    q = jnp.reshape(x, (B, C * W, H))
    energy = jnp.einsum("bik,bjk->bij", q, q)
    attention = jax.nn.sigmoid(jnp.max(energy, -1, keepdims=True) - energy)
    out = jnp.einsum("bij,bjk->bik", attention, q).reshape(x.shape)
    return gamma[0] * out + x


def _reference_bf16_matmuls(x, gamma):
    """Reference matching the kernel's numeric path (bf16 operands, f32 accum)."""
    B, C, H, W = x.shape
    q = jnp.reshape(x, (B, C * W, H))
    qb = q.astype(jnp.bfloat16)
    energy = jnp.einsum("bik,bjk->bij", qb, qb,
                        preferred_element_type=jnp.float32)
    attention = jax.nn.sigmoid(jnp.max(energy, -1, keepdims=True) - energy)
    out = jnp.einsum("bij,bjk->bik", attention.astype(jnp.bfloat16), qb,
                     preferred_element_type=jnp.float32).reshape(x.shape)
    return gamma[0] * out + x


if __name__ == "__main__":
    key = jax.random.PRNGKey(0)
    B, C, H, W = 2, 4, 16, 16
    x = jax.random.normal(key, (B, C, H, W), dtype=jnp.float32)

    gamma_zero = jnp.zeros((1,), dtype=jnp.float32)   # nn.Parameter(torch.zeros(1))
    gamma_test = jnp.array([0.5], dtype=jnp.float32)  # exercise the attention path

    for gamma in (gamma_zero, gamma_test):
        out = jax.block_until_ready(cwcw_module(x, gamma))
        assert out.shape == (B, C, H, W)

        # Check against a reference using the same bf16-operand / f32-accumulation
        # matmul path as the kernel (catches any layout / rowmax / gamma bug).
        ref_mx = _reference_bf16_matmuls(x, gamma)
        assert jnp.allclose(out, ref_mx, atol=1e-2, rtol=1e-2), (
            f"kernel vs bf16-matmul reference: max abs err "
            f"{jnp.max(jnp.abs(out - ref_mx))}")

        # Looser sanity check against the exact f32 PyTorch-equivalent math;
        # the only difference is bf16 rounding of the MXU operands.
        ref = _reference(x, gamma)
        assert jnp.allclose(out, ref, atol=5e-2, rtol=2e-2), (
            f"kernel vs f32 reference: max abs err {jnp.max(jnp.abs(out - ref))}")

    print("KERNEL_OK")
</pallas_src>

<mosaic_0001>
module attributes {stable_mosaic.version = 11 : i64} {
  func.func @_cwcw_kernel(%arg0: i32, %arg1: i32, %arg2: memref<1xf32, #tpu.memory_space<smem>>, %arg3: memref<1x16x64xf32, #tpu.memory_space<vmem>>, %arg4: memref<1x16x64xf32, #tpu.memory_space<vmem>>, %arg5: memref<1x16x64xf32, #tpu.memory_space<vmem>>) attributes {dimension_semantics = [#tpu.dimension_semantics<parallel>, #tpu.dimension_semantics<parallel>], iteration_bounds = array<i64: 2, 1>, scalar_prefetch = 0 : i64, scratch_operands = 0 : i64, tpu.core_type = #tpu.core_type<tc>, window_params = [{transform_indices = @transform_0, window_bounds = array<i64: 1>}, {transform_indices = @transform_1, window_bounds = array<i64: 1, 16, 64>}, {transform_indices = @transform_2, window_bounds = array<i64: 1, 16, 64>}, {transform_indices = @transform_3, window_bounds = array<i64: 1, 16, 64>}]} {
    %c0 = arith.constant 0 : index
    %0 = memref.load %arg2[%c0] : memref<1xf32, #tpu.memory_space<smem>>
    %c0_0 = arith.constant 0 : index
    %c0_1 = arith.constant 0 : index
    %c0_2 = arith.constant 0 : index
    %1 = vector.load %arg3[%c0_0, %c0_1, %c0_2] : memref<1x16x64xf32, #tpu.memory_space<vmem>>, vector<1x16x64xf32>
    %2 = vector.shape_cast %1 : vector<1x16x64xf32> to vector<16x64xf32>
    %c0_3 = arith.constant 0 : index
    %c0_4 = arith.constant 0 : index
    %c0_5 = arith.constant 0 : index
    %3 = vector.load %arg4[%c0_3, %c0_4, %c0_5] : memref<1x16x64xf32, #tpu.memory_space<vmem>>, vector<1x16x64xf32>
    %4 = vector.shape_cast %3 : vector<1x16x64xf32> to vector<16x64xf32>
    %5 = arith.truncf %2 : vector<16x64xf32> to vector<16x64xbf16>
    %6 = arith.truncf %4 : vector<16x64xf32> to vector<16x64xbf16>
    %cst = arith.constant dense<0.000000e+00> : vector<64x64xf32>
    %7 = tpu.matmul %5, %6, %cst {dimension_numbers = #tpu.dot_dimension_numbers<[0], [0], [1], [1], [0, 1, 1, 1], [], []>} : vector<16x64xbf16>, vector<16x64xbf16>, vector<64x64xf32> -> vector<64x64xf32>
    %cst_6 = arith.constant dense<0xFF800000> : vector<64xf32>
    %8 = vector.multi_reduction <maximumf>, %7, %cst_6 [1] : vector<64x64xf32> to vector<64xf32>
    %9 = vector.shape_cast %8 : vector<64xf32> to vector<64x1xf32>
    %10 = vector.broadcast %9 : vector<64x1xf32> to vector<64x64xf32>
    %11 = arith.subf %10, %7 : vector<64x64xf32>
    %cst_7 = arith.constant 5.000000e-01 : f32
    %12 = vector.broadcast %cst_7 : f32 to vector<64x64xf32>
    %13 = arith.mulf %12, %11 : vector<64x64xf32>
    %14 = math.tanh %13 : vector<64x64xf32>
    %cst_8 = arith.constant 1.000000e+00 : f32
    %15 = vector.broadcast %cst_8 : f32 to vector<64x64xf32>
    %16 = arith.addf %14, %15 : vector<64x64xf32>
    %cst_9 = arith.constant 5.000000e-01 : f32
    %17 = vector.broadcast %cst_9 : f32 to vector<64x64xf32>
    %18 = arith.mulf %17, %16 : vector<64x64xf32>
    %19 = arith.truncf %18 : vector<64x64xf32> to vector<64x64xbf16>
    %cst_10 = arith.constant dense<0.000000e+00> : vector<16x64xf32>
    %20 = tpu.matmul %6, %19, %cst_10 {dimension_numbers = #tpu.dot_dimension_numbers<[1], [1], [0], [0], [0, 0, 1, 0], [], []>} : vector<16x64xbf16>, vector<64x64xbf16>, vector<16x64xf32> -> vector<16x64xf32>
    %21 = vector.broadcast %0 : f32 to vector<16x64xf32>
    %22 = arith.mulf %21, %20 : vector<16x64xf32>
    %23 = arith.addf %22, %2 : vector<16x64xf32>
    %c0_11 = arith.constant 0 : index
    %c0_12 = arith.constant 0 : index
    %c0_13 = arith.constant 0 : index
    %24 = vector.load %arg5[%c0_11, %c0_12, %c0_13] : memref<1x16x64xf32, #tpu.memory_space<vmem>>, vector<1x16x64xf32>
    %25 = vector.shape_cast %24 : vector<1x16x64xf32> to vector<16x64xf32>
    %26 = vector.shape_cast %23 : vector<16x64xf32> to vector<1x16x64xf32>
    tpu.vector_store %arg5[%c0_11, %c0_12, %c0_13], %26 {strides = array<i32>} : memref<1x16x64xf32, #tpu.memory_space<vmem>>, vector<1x16x64xf32>,
    return
  }
  func.func @transform_0(%arg0: i32, %arg1: i32) -> i32 {
    %c0_i32 = arith.constant 0 : i32
    %c0_i32_0 = arith.constant 0 : i32
    return %c0_i32 : i32
  }
  func.func @transform_1(%arg0: i32, %arg1: i32) -> (i32, i32, i32) {
    %c0_i32 = arith.constant 0 : i32
    %c0_i32_0 = arith.constant 0 : i32
    return %arg0, %c0_i32, %arg1 : i32, i32, i32
  }
  func.func @transform_2(%arg0: i32, %arg1: i32) -> (i32, i32, i32) {
    %c0_i32 = arith.constant 0 : i32
    %c0_i32_0 = arith.constant 0 : i32
    %c0_i32_1 = arith.constant 0 : i32
    return %arg0, %c0_i32, %c0_i32_0 : i32, i32, i32
  }
  func.func @transform_3(%arg0: i32, %arg1: i32) -> (i32, i32, i32) {
    %c0_i32 = arith.constant 0 : i32
    %c0_i32_0 = arith.constant 0 : i32
    return %arg0, %c0_i32, %arg1 : i32, i32, i32
  }
}

</mosaic_0001>

<llo_original>
// kernel: tpu_custom_call.1
$region0: #{tpu_custom_call.1}
  #allocation0 [shape = 'u32[]', space=smem, size = 0x4, offset = 0x4, fixed_abs, tag = 'smem constant byte address 0x4 - core index']
  #allocation1 [shape = 'u32[144,128]{1,0:T(1,128)}', space=vmem, size = 0x12000, scoped, tag = 'internal scratch']
  #allocation2 [shape = 'f32[1]{0:T(128)S(6)}', space=smem, size = 0x200, scoped, tag = 'scoped memory for tpu_custom_call.1']
  %s0 = inlined_call_operand.<no memory space> [shape: f32[1], index: 0, kind: input, shape index: {}]
  %s1 = inlined_call_operand.hbm [shape: f32[2,16,64], index: 1, kind: input, shape index: {}]
  %s2 = inlined_call_operand.hbm [shape: f32[2,16,64], index: 2, kind: input, shape index: {}]
  %s3 = inlined_call_operand.hbm [shape: f32[2,16,64], index: 3, kind: output, shape index: {}]
  %s4 = sld [smem:[#allocation0]]
  $region53: #{tpu_custom_call.1} parent=0
    _
  %s6 = ssub.s32 1, %s4
  %s7 = scalar_select 0, %s6, %s4
  %8 = sst [smem:[#allocation2]] %s0
  $region1: #{tpu_custom_call.1} parent=0
    #allocation3 [shape = 'u8[16384]{0}', space=vmem, size = 0x4000, scoped, tag = 'input window, operand 1']
    #allocation4 [shape = 's32[2]{0}', space=sflag, size = 0x8, scoped, tag = 'scoped memory for tpu_custom_call.1']
    #allocation5 [shape = 's32[2]{0}', space=sflag, size = 0x8, scoped, tag = 'scoped memory for tpu_custom_call.1']
    #allocation6 [shape = 'u8[16384]{0}', space=vmem, size = 0x4000, scoped, tag = 'input window, operand 2']
    #allocation7 [shape = 's32[2]{0}', space=sflag, size = 0x8, scoped, tag = 'scoped memory for tpu_custom_call.1']
    #allocation8 [shape = 'u8[16384]{0}', space=vmem, size = 0x4000, scoped, tag = 'output window, operand 0']
    %9 = vsyncpa [#allocation4], 0
    %s10 = scalar_lea.sflag [#allocation4], 1
    %11 = vsyncpa %s10, 0
    %12 = vsyncpa [#allocation7], 0
    %s13 = scalar_lea.sflag [#allocation7], 1
    %14 = vsyncpa %s13, 0
    %15 = vsyncpa [#allocation5], 0
    %s16 = scalar_lea.sflag [#allocation5], 1
    %17 = vsyncpa %s16, 0
    loop: start=0, step=1, limit=4
    $region2: #{tpu_custom_call.1} parent=1 // loop_pre_header
      _
    $region3: #{tpu_custom_call.1} parent=1 // loop_header
      %s19 = sphi 0, %s23
      %p20 = scmp.ge.s32.totalorder %s19, 4
      %s26 = sphi 0, %s38
      %s27 = sphi 0, %s34
      %s28 = sphi 0, %s26
      %s29 = sphi 0, %s27
      %s30 = sphi 0, %s28
      %s31 = sphi 0, %s29
      %s39 = sphi 0, %s39
      %s41 = sphi 0, %s39
      %s42 = sphi 0, %s41
      %s56 = sphi 0, %s42
      %s64 = sphi 0, %s66
      %s67 = sphi 0, %s64
      %s68 = sphi 0, %s67
      %s84 = sphi 0, %s68
      %s90 = sphi 0, %s92
      %s93 = sphi 0, %s90
      %s94 = sphi 0, %s93
      %s110 = sphi 0, %s94
      %s118 = sphi 0, %s120
      %s121 = sphi 0, %s118
      %s122 = sphi 0, %s121
      %s138 = sphi 0, %s122
    $region4: #{tpu_custom_call.1} parent=1 // loop_header_branch
      %22 = sbr.rel (%p20) target = $region8
    $region5: #{tpu_custom_call.1} parent=1 // loop_body
      %s24 = ssub.s32 %s19, 1
      %s25 = ssub.s32 %s19, 2
      %s32 = sadd.s32 1, %s27
      %p33 = scmp.ge.s32.totalorder %s32, 1
      %s34 = scalar_select %p33, 0, %s32
      %s35 = sadd.s32 1, %s26
      %s36 = scalar_select %p33, %s35, %s26
      %p37 = scmp.ge.s32.totalorder %s36, 2
      %s38 = scalar_select %p37, 0, %s36
      %s40 = sadd.s32 %s39, 1
      %p43 = scmp.eq.s32.totalorder %s19, 1
      %p44 = scmp.ne.s32.totalorder %s39, %s41
      %p45 = scmp.eq.s32.totalorder %s19, 0
      %p46 = por %p44, %p45
      %p47 = scmp.ne.s32.totalorder %s39, %s41
      %p48 = scmp.eq.s32.totalorder %s24, 1
      %p49 = por %p47, %p48
      %p50 = scmp.ne.s32.totalorder %s41, %s42
      %p51 = scmp.eq.s32.totalorder %s24, 0
      %p52 = por %p50, %p51
      %p53 = scmp.ne.s32.totalorder %s41, %s42
      %p54 = scmp.eq.s32.totalorder %s25, 1
      %p55 = por %p53, %p54
      %p57 = scmp.ne.s32.totalorder %s42, %s56
      %p58 = scmp.eq.s32.totalorder %s25, 0
      %p59 = por %p57, %p58
      %s60 = ssub.s32 %s26, %s38
      %s61 = ssub.s32 %s27, %s34
      %s62 = sor.u32 %s60, %s61
      %p63 = scmp.eq.s32.totalorder %s62, 0
      %s65 = sadd.s32 %s64, 1
      %s66 = scalar_select %p63, %s64, %s65
      %p69 = pneg %p63
      %p70 = scmp.eq.s32.totalorder %s19, 1
      %p71 = por %p69, %p70
      %p72 = scmp.ne.s32.totalorder %s64, %s67
      %p73 = scmp.eq.s32.totalorder %s19, 0
      %p74 = por %p72, %p73
      %p75 = scmp.ne.s32.totalorder %s64, %s67
      %p76 = scmp.eq.s32.totalorder %s24, 1
      %p77 = por %p75, %p76
      %p78 = scmp.ne.s32.totalorder %s67, %s68
      %p79 = scmp.eq.s32.totalorder %s24, 0
      %p80 = por %p78, %p79
      %p81 = scmp.ne.s32.totalorder %s67, %s68
      %p82 = scmp.eq.s32.totalorder %s25, 1
      %p83 = por %p81, %p82
      %p85 = scmp.ne.s32.totalorder %s68, %s84
      %p86 = scmp.eq.s32.totalorder %s25, 0
      %p87 = por %p85, %p86
      %s88 = ssub.s32 %s26, %s38
      %p89 = scmp.eq.s32.totalorder %s88, 0
      %s91 = sadd.s32 %s90, 1
      %s92 = scalar_select %p89, %s90, %s91
      %p95 = pneg %p89
      %p96 = scmp.eq.s32.totalorder %s19, 1
      %p97 = por %p95, %p96
      %p98 = scmp.ne.s32.totalorder %s90, %s93
      %p99 = scmp.eq.s32.totalorder %s19, 0
      %p100 = por %p98, %p99
      %p101 = scmp.ne.s32.totalorder %s90, %s93
      %p102 = scmp.eq.s32.totalorder %s24, 1
      %p103 = por %p101, %p102
      %p104 = scmp.ne.s32.totalorder %s93, %s94
      %p105 = scmp.eq.s32.totalorder %s24, 0
      %p106 = por %p104, %p105
      %p107 = scmp.ne.s32.totalorder %s93, %s94
      %p108 = scmp.eq.s32.totalorder %s25, 1
      %p109 = por %p107, %p108
      %p111 = scmp.ne.s32.totalorder %s94, %s110
      %p112 = scmp.eq.s32.totalorder %s25, 0
      %p113 = por %p111, %p112
      %s114 = ssub.s32 %s26, %s38
      %s115 = ssub.s32 %s27, %s34
      %s116 = sor.u32 %s114, %s115
      %p117 = scmp.eq.s32.totalorder %s116, 0
      %s119 = sadd.s32 %s118, 1
      %s120 = scalar_select %p117, %s118, %s119
      %p123 = pneg %p117
      %p124 = scmp.eq.s32.totalorder %s19, 1
      %p125 = por %p123, %p124
      %p126 = scmp.ne.s32.totalorder %s118, %s121
      %p127 = scmp.eq.s32.totalorder %s19, 0
      %p128 = por %p126, %p127
      %p129 = scmp.ne.s32.totalorder %s118, %s121
      %p130 = scmp.eq.s32.totalorder %s24, 1
      %p131 = por %p129, %p130
      %p132 = scmp.ne.s32.totalorder %s121, %s122
      %p133 = scmp.eq.s32.totalorder %s24, 0
      %p134 = por %p132, %p133
      %p135 = scmp.ne.s32.totalorder %s121, %s122
      %p136 = scmp.eq.s32.totalorder %s25, 1
      %p137 = por %p135, %p136
      %p139 = scmp.ne.s32.totalorder %s122, %s138
      %p140 = scmp.eq.s32.totalorder %s25, 0
      %p141 = por %p139, %p140
      %p142 = scmp.le.s32.totalorder 1, %s19
      %p143 = scmp.lt.s32.totalorder %s19, 3
      %p144 = pnand %p142, %p143
      %p145 = pneg %p144
      // Predicated region
      $region9: #{tpu_custom_call.1} parent=5 // pred_check
        _
      $region10: #{tpu_custom_call.1} parent=5 // pred_check_branch
        %147 = sbr.rel (%p144) target = $region12
      $region11: #{tpu_custom_call.1} parent=5 // pred_region
        %s148 = ssub.s32 %s19, 1
        // Predicated region
        $region13: #{tpu_custom_call.1} parent=11 // pred_check
          %p149 = pneg %p52
        $region14: #{tpu_custom_call.1} parent=11 // pred_check_branch
          %151 = sbr.rel (%p149) target = $region16
        $region15: #{tpu_custom_call.1} parent=11 // pred_region
          _
        $region16: #{tpu_custom_call.1} parent=11 // pred_fallthru
          _
      $region12: #{tpu_custom_call.1} parent=5 // pred_fallthru
        _
      %p152 = scmp.lt.s32.totalorder %s19, 2
      // Predicated region
      $region17: #{tpu_custom_call.1} parent=5 // pred_check
        %p153 = pneg %p152
      $region18: #{tpu_custom_call.1} parent=5 // pred_check_branch
        %155 = sbr.rel (%p153) target = $region20
      $region19: #{tpu_custom_call.1} parent=5 // pred_region
        // Predicated region
        $region21: #{tpu_custom_call.1} parent=19 // pred_check
          %p156 = pneg %p74
        $region22: #{tpu_custom_call.1} parent=19 // pred_check_branch
          %158 = sbr.rel (%p156) target = $region24
        $region23: #{tpu_custom_call.1} parent=19 // pred_region
          %s159 = sand.u32 %s64, 1
          %s160 = scalar_lea.sflag [#allocation4], %s159
          %s161 = sand.u32 %s64, 1
          %s162 = smul.addr %s161, 16
          %s163 = scalar_lea.vmem [#allocation3], %s162
          %s165 = ssub.s32 256, 256
          %166 = vsyncadd %s160, %s165
          %s167 = smul.addr %s26, 2
          %s168 = sadd.s32 %s27, %s167
          %s169 = smul.addr %s168, 128
          %s170 = scalar_lea.hbm %s1, %s169
          %s171 = sshll.u32 %s163, 4
          %s172 = int_to_ptr.vmem [resolvable:$true] %s171
          %177 = dma.hbm_to_vmem [thread:$0]  %s170, 256, %s172, %s160, 128, 128, 8
        $region24: #{tpu_custom_call.1} parent=19 // pred_fallthru
          _
        // Predicated region
        $region25: #{tpu_custom_call.1} parent=19 // pred_check
          %p178 = pneg %p100
        $region26: #{tpu_custom_call.1} parent=19 // pred_check_branch
          %180 = sbr.rel (%p178) target = $region28
        $region27: #{tpu_custom_call.1} parent=19 // pred_region
          %s181 = sand.u32 %s90, 1
          %s182 = scalar_lea.sflag [#allocation7], %s181
          %s183 = sand.u32 %s90, 1
          %s184 = smul.addr %s183, 16
          %s185 = scalar_lea.vmem [#allocation6], %s184
          %s187 = ssub.s32 256, 256
          %188 = vsyncadd %s182, %s187
          %s189 = smul.addr %s26, 2
          %s190 = smul.addr %s189, 128
          %s191 = scalar_lea.hbm %s2, %s190
          %s192 = sshll.u32 %s185, 4
          %s193 = int_to_ptr.vmem [resolvable:$true] %s192
          %198 = dma.hbm_to_vmem [thread:$0]  %s191, 256, %s193, %s182, 128, 128, 8
        $region28: #{tpu_custom_call.1} parent=19 // pred_fallthru
          _
      $region20: #{tpu_custom_call.1} parent=5 // pred_fallthru
        _
      %p199 = scmp.le.s32.totalorder 1, %s19
      %p200 = scmp.lt.s32.totalorder %s19, 3
      %p201 = pnand %p199, %p200
      %p202 = pneg %p201
      // Predicated region
      $region29: #{tpu_custom_call.1} parent=5 // pred_check
        _
      $region30: #{tpu_custom_call.1} parent=5 // pred_check_branch
        %204 = sbr.rel (%p201) target = $region32
      $region31: #{tpu_custom_call.1} parent=5 // pred_region
        %s205 = ssub.s32 %s19, 1
        %s206 = sand.u32 %s67, 1
        %s207 = scalar_lea.sflag [#allocation4], %s206
        %s208 = sand.u32 %s67, 1
        %s209 = smul.addr %s208, 16
        %s210 = scalar_lea.vmem [#allocation3], %s209
        // Predicated region
        $region33: #{tpu_custom_call.1} parent=31 // pred_check
          %p211 = pneg %p80
        $region34: #{tpu_custom_call.1} parent=31 // pred_check_branch
          %213 = sbr.rel (%p211) target = $region36
        $region35: #{tpu_custom_call.1} parent=31 // pred_region
          %214 = dma.done %s207, 256
        $region36: #{tpu_custom_call.1} parent=31 // pred_fallthru
          _
        %s215 = sand.u32 %s93, 1
        %s216 = scalar_lea.sflag [#allocation7], %s215
        %s217 = sand.u32 %s93, 1
        %s218 = smul.addr %s217, 16
        %s219 = scalar_lea.vmem [#allocation6], %s218
        // Predicated region
        $region37: #{tpu_custom_call.1} parent=31 // pred_check
          %p220 = pneg %p106
        $region38: #{tpu_custom_call.1} parent=31 // pred_check_branch
          %222 = sbr.rel (%p220) target = $region40
        $region39: #{tpu_custom_call.1} parent=31 // pred_region
          %223 = dma.done %s216, 256
        $region40: #{tpu_custom_call.1} parent=31 // pred_fallthru
          _
        %p224 = pneg %p52
        %p225 = pneg %p49
        %s226 = sand.u32 %s67, 1
        %s227 = scalar_lea.sflag [#allocation4], %s226
        %s228 = sand.u32 %s67, 1
        %s229 = smul.addr %s228, 16
        %s230 = scalar_lea.vmem [#allocation3], %s229
        %p231 = pneg %p80
        %p232 = pneg %p77
        %s233 = sand.u32 %s93, 1
        %s234 = scalar_lea.sflag [#allocation7], %s233
        %s235 = sand.u32 %s93, 1
        %s236 = smul.addr %s235, 16
        %s237 = scalar_lea.vmem [#allocation6], %s236
        %p238 = pneg %p106
        %p239 = pneg %p103
        %p240 = pneg %p134
        %p241 = pneg %p131
        %s242 = sand.u32 %s121, 1
        %s243 = scalar_lea.sflag [#allocation5], %s242
        %s244 = sand.u32 %s121, 1
        %s245 = smul.addr %s244, 16
        %s246 = scalar_lea.vmem [#allocation8], %s245
        %s248 = sld [smem:[#allocation2]]
        %v249 = vld [vmem:[%s210] sm:$0xff]
        %v250 = vld [vmem:[%s210 + $0x8] sm:$0xff]
        %v251 = vld [vmem:[%s219] sm:$0xff]
        %v252 = vld [vmem:[%s219 + $0x8] sm:$0xff]
        %v253 = vpack.c.bf16 %v250, %v249
        %v254 = vpack.c.bf16 %v252, %v251
        %255 = vxpose.xlu0.c.b16.start [1/8] %v253, 128
        %256 = vxpose.xlu0.c.b16.cont [2/8] 0, 128
        %257 = vxpose.xlu0.c.b16.cont [3/8] 0, 128
        %258 = vxpose.xlu0.c.b16.cont [4/8] 0, 128
        %259 = vxpose.xlu0.c.b16.cont [5/8] 0, 128
        %260 = vxpose.xlu0.c.b16.cont [6/8] 0, 128
        %261 = vxpose.xlu0.c.b16.cont [7/8] 0, 128
        %262 = vxpose.xlu0.c.b16.end [8/8] 0, 128
        %v263 = vpop.trf.xlu0
        %v264 = vpop.trf.xlu0
        %v265 = vpop.trf.xlu0
        %v266 = vpop.trf.xlu0
        %v267 = vpop.trf.xlu0
        %v268 = vpop.trf.xlu0
        %v269 = vpop.trf.xlu0
        %v270 = vpop.trf.xlu0
        %vm271 = vcmask 130048
        %v273 = vsel %vm271, %v263, 0
        %v276 = vsel %vm271, %v264, 0
        %v279 = vsel %vm271, %v265, 0
        %v282 = vsel %vm271, %v266, 0
        %284 = vmatprep.subr.bf16.mxu0 0
        %285 = vmatpush1.bf16.msra.mxu0 0
        %286 = vmatprep.subr.bf16.mxu0 0
        %287 = vmatpush1.bf16.msra.mxu0 0
        %288 = vmatprep.subr.bf16.mxu0 0
        %289 = vmatpush1.bf16.msra.mxu0 0
        %290 = vmatprep.subr.bf16.mxu0 0
        %291 = vmatpush1.bf16.msra.mxu0 0
        %292 = vmatprep.subr.bf16.mxu0 0
        %293 = vmatpush1.bf16.msra.mxu0 0
        %294 = vmatprep.subr.bf16.mxu0 0
        %295 = vmatpush1.bf16.msra.mxu0 0
        %296 = vmatprep.subr.bf16.mxu0 0
        %297 = vmatpush1.bf16.msra.mxu0 0
        %298 = vmatprep.subr.bf16.mxu0 0
        %299 = vmatpush1.bf16.msra.mxu0 %v254
        %300 = vmatprep.subr.bf16.mxu0 0
        %301 = vmatpush2.bf16.msra.mxu0 0
        %302 = vmatprep.subr.bf16.mxu0 0
        %303 = vmatpush2.bf16.msra.mxu0 0
        %304 = vmatprep.subr.bf16.mxu0 0
        %305 = vmatpush2.bf16.msra.mxu0 0
        %306 = vmatprep.subr.bf16.mxu0 0
        %307 = vmatpush2.bf16.msra.mxu0 0
        %308 = vmatprep.subr.bf16.mxu0 0
        %309 = vmatpush2.bf16.msra.mxu0 0
        %310 = vmatprep.subr.bf16.mxu0 0
        %311 = vmatpush2.bf16.msra.mxu0 0
        %312 = vmatprep.subr.bf16.mxu0 0
        %313 = vmatpush2.bf16.msra.mxu0 0
        %314 = vmatprep.subr.bf16.mxu0 0
        %315 = vmatpush2.bf16.msra.mxu0 0
        %316 = vmatprep.mubr.bf16.mxu0 0
        %317 = vmatmul.mubr.bf16.gmra.mxu0 %v273
        %v318 = vpop.f32.mrf.mxu0
        %v319 = vadd.f32 0.0, %v318
        %v320 = vpop.f32.mrf.mxu0
        %v321 = vpop.f32.mrf.mxu0
        %v322 = vadd.f32 0.0, %v321
        %v323 = vpop.f32.mrf.mxu0
        %324 = vmatprep.mubr.bf16.mxu0 0
        %325 = vmatmul.mubr.bf16.gmra.mxu0 %v276
        %v326 = vpop.f32.mrf.mxu0
        %v327 = vadd.f32 0.0, %v326
        %v328 = vpop.f32.mrf.mxu0
        %v329 = vpop.f32.mrf.mxu0
        %v330 = vadd.f32 0.0, %v329
        %v331 = vpop.f32.mrf.mxu0
        %332 = vmatprep.mubr.bf16.mxu0 0
        %333 = vmatmul.mubr.bf16.gmra.mxu0 %v279
        %v334 = vpop.f32.mrf.mxu0
        %v335 = vadd.f32 0.0, %v334
        %v336 = vpop.f32.mrf.mxu0
        %v337 = vpop.f32.mrf.mxu0
        %v338 = vadd.f32 0.0, %v337
        %v339 = vpop.f32.mrf.mxu0
        %340 = vmatprep.mubr.bf16.mxu0 0
        %341 = vmatmul.mubr.bf16.gmra.mxu0 %v282
        %v342 = vpop.f32.mrf.mxu0
        %v343 = vadd.f32 0.0, %v342
        %v344 = vpop.f32.mrf.mxu0
        %v345 = vpop.f32.mrf.mxu0
        %v346 = vadd.f32 0.0, %v345
        %v347 = vpop.f32.mrf.mxu0
        %348 = vdwg.mxu0
        %vm349 = vcmask 523264
        %v350 = vsel %vm349, %v319, -inf
        %351 = vmax.xlane.f32.xlu0 %v350
        %v352 = vpop.xlane.xlu0 %351
        %v353 = vsel %vm349, %v322, -inf
        %354 = vmax.xlane.f32.xlu0 %v353
        %v355 = vpop.xlane.xlu0 %354
        %v356 = vsel %vm349, %v327, -inf
        %357 = vmax.xlane.f32.xlu0 %v356
        %v358 = vpop.xlane.xlu0 %357
        %v359 = vsel %vm349, %v330, -inf
        %360 = vmax.xlane.f32.xlu0 %v359
        %v361 = vpop.xlane.xlu0 %360
        %v362 = vsel %vm349, %v335, -inf
        %363 = vmax.xlane.f32.xlu0 %v362
        %v364 = vpop.xlane.xlu0 %363
        %v365 = vsel %vm349, %v338, -inf
        %366 = vmax.xlane.f32.xlu0 %v365
        %v367 = vpop.xlane.xlu0 %366
        %v368 = vsel %vm349, %v343, -inf
        %369 = vmax.xlane.f32.xlu0 %v368
        %v370 = vpop.xlane.xlu0 %369
        %v371 = vsel %vm349, %v346, -inf
        %372 = vmax.xlane.f32.xlu0 %v371
        %v373 = vpop.xlane.xlu0 %372
        %v374 = vsub.f32 %v352, %v319
        %v375 = vsub.f32 %v355, %v322
        %v376 = vsub.f32 %v358, %v327
        %v377 = vsub.f32 %v361, %v330
        %v378 = vsub.f32 %v364, %v335
        %v379 = vsub.f32 %v367, %v338
        %v380 = vsub.f32 %v370, %v343
        %v381 = vsub.f32 %v373, %v346
        %v382 = vmul.f32 %v374, 0.5
        %v383 = vmul.f32 %v375, 0.5
        %v384 = vmul.f32 %v376, 0.5
        %v385 = vmul.f32 %v377, 0.5
        %v386 = vmul.f32 %v378, 0.5
        %v387 = vmul.f32 %v379, 0.5
        %v388 = vmul.f32 %v380, 0.5
        %v389 = vmul.f32 %v381, 0.5
        %v390 = vtanh.pop %v382
        %v391 = vtanh.pop %v383
        %v392 = vtanh.pop %v384
        %v393 = vtanh.pop %v385
        %v394 = vtanh.pop %v386
        %v395 = vtanh.pop %v387
        %v396 = vtanh.pop %v388
        %v397 = vtanh.pop %v389
        %v398 = vadd.f32 %v390, 1.0
        %v399 = vadd.f32 %v391, 1.0
        %v400 = vadd.f32 %v392, 1.0
        %v401 = vadd.f32 %v393, 1.0
        %v402 = vadd.f32 %v394, 1.0
        %v403 = vadd.f32 %v395, 1.0
        %v404 = vadd.f32 %v396, 1.0
        %v405 = vadd.f32 %v397, 1.0
        %v406 = vmul.f32 %v398, 0.5
        %v407 = vmul.f32 %v399, 0.5
        %v408 = vmul.f32 %v400, 0.5
        %v409 = vmul.f32 %v401, 0.5
        %v410 = vmul.f32 %v402, 0.5
        %v411 = vmul.f32 %v403, 0.5
        %v412 = vmul.f32 %v404, 0.5
        %v413 = vmul.f32 %v405, 0.5
        %v414 = vpack.c.bf16 %v407, %v406
        %v415 = vpack.c.bf16 %v409, %v408
        %v416 = vpack.c.bf16 %v411, %v410
        %v417 = vpack.c.bf16 %v413, %v412
        %v419 = vsel %vm349, %v254, 0
        %v422 = vsel %vm349, %v414, 0
        %v425 = vsel %vm349, %v415, 0
        %v428 = vsel %vm349, %v416, 0
        %v431 = vsel %vm349, %v417, 0
        %433 = vmatprep.subr.bf16.mxu0 0
        %434 = vmatpush1.bf16.xpose.msra.mxu0 0
        %435 = vmatprep.subr.bf16.mxu0 0
        %436 = vmatpush1.bf16.xpose.msra.mxu0 0
        %437 = vmatprep.subr.bf16.mxu0 0
        %438 = vmatpush1.bf16.xpose.msra.mxu0 0
        %439 = vmatprep.subr.bf16.mxu0 0
        %440 = vmatpush1.bf16.xpose.msra.mxu0 0
        %441 = vmatprep.subr.bf16.mxu0 0
        %442 = vmatpush1.bf16.xpose.msra.mxu0 %v431
        %443 = vmatprep.subr.bf16.mxu0 0
        %444 = vmatpush1.bf16.xpose.msra.mxu0 %v428
        %445 = vmatprep.subr.bf16.mxu0 0
        %446 = vmatpush1.bf16.xpose.msra.mxu0 %v425
        %447 = vmatprep.subr.bf16.mxu0 0
        %448 = vmatpush1.bf16.xpose.msra.mxu0 %v422
        %449 = vmatprep.subr.bf16.mxu0 0
        %450 = vmatpush2.bf16.xpose.msra.mxu0 0
        %451 = vmatprep.subr.bf16.mxu0 0
        %452 = vmatpush2.bf16.xpose.msra.mxu0 0
        %453 = vmatprep.subr.bf16.mxu0 0
        %454 = vmatpush2.bf16.xpose.msra.mxu0 0
        %455 = vmatprep.subr.bf16.mxu0 0
        %456 = vmatpush2.bf16.xpose.msra.mxu0 0
        %457 = vmatprep.subr.bf16.mxu0 0
        %458 = vmatpush2.bf16.xpose.msra.mxu0 0
        %459 = vmatprep.subr.bf16.mxu0 0
        %460 = vmatpush2.bf16.xpose.msra.mxu0 0
        %461 = vmatprep.subr.bf16.mxu0 0
        %462 = vmatpush2.bf16.xpose.msra.mxu0 0
        %463 = vmatprep.subr.bf16.mxu0 0
        %464 = vmatpush2.bf16.xpose.msra.mxu0 0
        %465 = vmatprep.mubr.bf16.mxu0 0
        %466 = vmatmul.mubr.bf16.gmra.mxu0 %v419
        %v467 = vpop.f32.mrf.mxu0
        %v468 = vadd.f32 0.0, %v467
        %v469 = vpop.f32.mrf.mxu0
        %v470 = vpop.f32.mrf.mxu0
        %v471 = vadd.f32 0.0, %v470
        %v472 = vpop.f32.mrf.mxu0
        %473 = vdwg.mxu0
        %v474 = vstv %s248
        %v475 = vmul.f32 %v474, %v468
        %v476 = vmul.f32 %v474, %v471
        %v477 = vadd.f32 %v475, %v249
        %v478 = vadd.f32 %v476, %v250
        %479 = vst.msk [vmem:[%s246] sm:$0xff] %vm349, %v477
        %480 = vst.msk [vmem:[%s246 + $0x8] sm:$0xff] %vm349, %v478
        %s481 = sand.u32 %s121, 1
        %s482 = scalar_lea.sflag [#allocation5], %s481
        %s483 = sand.u32 %s121, 1
        %s484 = smul.addr %s483, 16
        %s485 = scalar_lea.vmem [#allocation8], %s484
        // Predicated region
        $region41: #{tpu_custom_call.1} parent=31 // pred_check
          %p486 = pneg %p131
        $region42: #{tpu_custom_call.1} parent=31 // pred_check_branch
          %488 = sbr.rel (%p486) target = $region44
        $region43: #{tpu_custom_call.1} parent=31 // pred_region
          %s490 = ssub.s32 256, 256
          %491 = vsyncadd %s482, %s490
          %s492 = smul.addr %s28, 2
          %s493 = sadd.s32 %s29, %s492
          %s494 = smul.addr %s493, 128
          %s495 = scalar_lea.hbm %s3, %s494
          %s496 = sshll.u32 %s485, 4
          %s497 = int_to_ptr.vmem [resolvable:$true] %s496
          %502 = dma.vmem_to_hbm [thread:$0]  %s497, 256, %s495, %s482, 128, 128, 8
        $region44: #{tpu_custom_call.1} parent=31 // pred_fallthru
          _
      $region32: #{tpu_custom_call.1} parent=5 // pred_fallthru
        _
      %p503 = scmp.le.s32.totalorder 2, %s19
      // Predicated region
      $region45: #{tpu_custom_call.1} parent=5 // pred_check
        %p504 = pneg %p503
      $region46: #{tpu_custom_call.1} parent=5 // pred_check_branch
        %506 = sbr.rel (%p504) target = $region48
      $region47: #{tpu_custom_call.1} parent=5 // pred_region
        %s507 = ssub.s32 %s19, 2
        // Predicated region
        $region49: #{tpu_custom_call.1} parent=47 // pred_check
          %p508 = pneg %p137
        $region50: #{tpu_custom_call.1} parent=47 // pred_check_branch
          %510 = sbr.rel (%p508) target = $region52
        $region51: #{tpu_custom_call.1} parent=47 // pred_region
          %s511 = sand.u32 %s122, 1
          %s512 = scalar_lea.sflag [#allocation5], %s511
          %s513 = sand.u32 %s122, 1
          %s514 = smul.addr %s513, 16
          %s515 = scalar_lea.vmem [#allocation8], %s514
          %516 = dma.done %s512, 256
        $region52: #{tpu_custom_call.1} parent=47 // pred_fallthru
          _
      $region48: #{tpu_custom_call.1} parent=5 // pred_fallthru
        _
    $region6: #{tpu_custom_call.1} parent=1 // loop_footer
      %s23 = sadd.s32 1, %s19
    $region7: #{tpu_custom_call.1} parent=1 // loop_footer_branch
      %18 = sbr.rel target = $region3
    $region8: #{tpu_custom_call.1} parent=1 // loop_exit
      _
    %517 = vsyncpa [#allocation4], 1
    %s518 = scalar_lea.sflag [#allocation4], 1
    %519 = vsyncpa %s518, 1
    %520 = vsyncpa [#allocation7], 1
    %s521 = scalar_lea.sflag [#allocation7], 1
    %522 = vsyncpa %s521, 1
    %523 = vsyncpa [#allocation5], 1
    %s524 = scalar_lea.sflag [#allocation5], 1
    %525 = vsyncpa %s524, 1

</llo_original>
